<compile_context>
chip_gen: v7x
topology: tpu7x:2x2x1
jax: 0.10.0
libtpu: 0.0.40
codegen_flags: <defaults>
</compile_context>

<pallas_src>
import jax
import jax.numpy as jnp
from jax.experimental import pallas as pl
from jax.experimental.pallas import tpu as pltpu


def _contour_kernel(x_ref, y_ref, p1_ref, p2_ref):
    # x_ref / y_ref: (B_blk, C, H, W) VMEM tiles for grid step g = program_id(0)
    # p1_ref / p2_ref: (1, 8, 128) f32 per-program partial-sum tiles.
    xf = x_ref[...].astype(jnp.float32)
    yf = y_ref[...].astype(jnp.float32)

    # channel-summed difference, shape (B_blk, H, W)
    d = jnp.sum(xf - yf, axis=1)
    _, H, W = d.shape

    # Separable Sobel, cross-correlation, valid region.
    # Sobel-x (C1 = [[-1,0,1],[-2,0,2],[-1,0,1]]):
    #   vertical [1,2,1] then horizontal [-1,0,1]
    v = d[:, 0:H - 2, :] + 2.0 * d[:, 1:H - 1, :] + d[:, 2:H, :]     # (B, H-2, W)
    gx = v[:, :, 2:W] - v[:, :, 0:W - 2]                             # (B, H-2, W-2)

    # Sobel-y (C2 = [[1,2,1],[0,0,0],[-1,-2,-1]]):
    #   horizontal [1,2,1] then vertical [1,0,-1]
    h = d[:, :, 0:W - 2] + 2.0 * d[:, :, 1:W - 1] + d[:, :, 2:W]     # (B, H, W-2)
    gy = h[:, 0:H - 2, :] - h[:, 2:H, :]                             # (B, H-2, W-2)

    s1 = jnp.sum(gx * gx)
    s2 = jnp.sum(gy * gy)

    # Dense, unmasked full-tile stores; wrapper reads lane [0, 0].
    p1_ref[...] = jnp.full(p1_ref.shape, s1, dtype=p1_ref.dtype)
    p2_ref[...] = jnp.full(p2_ref.shape, s2, dtype=p2_ref.dtype)


def c_contour(x, y, *, target_block_bytes=2 << 20):
    """Pallas implementation of C_contour.forward(x, y) -> scalar."""
    assert x.shape == y.shape and x.ndim == 4
    N, C, H, W = x.shape
    assert H >= 3 and W >= 3, "3x3 valid conv needs H, W >= 3"

    # Keep native input dtype on the wire (bf16 halves HBM traffic); promote
    # to f32 inside the kernel.
    itemsize = jnp.dtype(x.dtype).itemsize
    per_image_bytes = C * H * W * itemsize

    # Pick the largest batch fold B_blk (divisor of N) such that each input
    # block is at most ~target_block_bytes and the whole working set
    # (2 inputs x 2 pipeline buffers + ~f32 intermediates) stays well under
    # the v7x scoped-VMEM budget.
    B_blk = 1
    for b in range(1, N + 1):
        if N % b:
            continue
        in_bytes = b * per_image_bytes
        f32_bytes = b * H * W * 4
        vmem_need = 4 * in_bytes + 10 * f32_bytes
        if in_bytes <= max(target_block_bytes, per_image_bytes) and vmem_need <= (28 << 20):
            B_blk = b
    G = N // B_blk

    in_block_bytes = B_blk * per_image_bytes
    f32_block_bytes = B_blk * H * W * 4
    vmem_limit = int(min(48 << 20,
                         max(16 << 20, 4 * in_block_bytes + 10 * f32_block_bytes + (1 << 20))))

    cost = pl.CostEstimate(
        flops=int(N * H * W * (3 * C + 12)),
        transcendentals=0,
        bytes_accessed=int(2 * N * C * H * W * itemsize + 2 * G * 8 * 128 * 4),
    )

    p1, p2 = pl.pallas_call(
        _contour_kernel,
        out_shape=(jax.ShapeDtypeStruct((G, 8, 128), jnp.float32),
                   jax.ShapeDtypeStruct((G, 8, 128), jnp.float32)),
        grid_spec=pltpu.PrefetchScalarGridSpec(
            num_scalar_prefetch=0,
            grid=(G,),
            in_specs=[
                pl.BlockSpec((B_blk, C, H, W), lambda g: (g, 0, 0, 0)),
                pl.BlockSpec((B_blk, C, H, W), lambda g: (g, 0, 0, 0)),
            ],
            out_specs=[
                pl.BlockSpec((1, 8, 128), lambda g: (g, 0, 0)),
                pl.BlockSpec((1, 8, 128), lambda g: (g, 0, 0)),
            ],
        ),
        compiler_params=pltpu.CompilerParams(
            dimension_semantics=("parallel",),   # per-program outputs -> megacore-shardable
            vmem_limit_bytes=vmem_limit,
        ),
        cost_estimate=cost,
    )(x, y)

    # Tiny final reduction + Frobenius norms + sum (glue).
    s1 = jnp.sum(p1[:, 0, 0])
    s2 = jnp.sum(p2[:, 0, 0])
    return jnp.sqrt(s1) + jnp.sqrt(s2)


def _reference(x, y):
    """Pure-JAX reference matching the PyTorch module exactly (NCHW conv)."""
    C = x.shape[1]
    c1 = jnp.array([[-1., 0., 1.], [-2., 0., 2.], [-1., 0., 1.]], jnp.float32)
    c2 = jnp.array([[1., 2., 1.], [0., 0., 0.], [-1., -2., -1.]], jnp.float32)
    w1 = jnp.broadcast_to(c1, (1, C, 3, 3))   # Conv2d(nc, 1, 3) weight
    w2 = jnp.broadcast_to(c2, (1, C, 3, 3))

    def conv(inp, w):
        return jax.lax.conv_general_dilated(
            inp.astype(jnp.float32), w, window_strides=(1, 1), padding="VALID",
            dimension_numbers=("NCHW", "OIHW", "NCHW"))

    dx1 = conv(x, w1) - conv(y, w1)
    dx2 = conv(x, w2) - conv(y, w2)
    return jnp.sqrt(jnp.sum(dx1 * dx1)) + jnp.sqrt(jnp.sum(dx2 * dx2))


if __name__ == "__main__":
    key = jax.random.PRNGKey(0)
    kx, ky = jax.random.split(key)
    # opt.nc -> 4 channels; small NCHW images
    x = jax.random.normal(kx, (2, 4, 16, 16), dtype=jnp.float32)
    y = jax.random.normal(ky, (2, 4, 16, 16), dtype=jnp.float32)

    out = jax.block_until_ready(c_contour(x, y))
    ref = jax.block_until_ready(_reference(x, y))

    assert jnp.allclose(out, ref, rtol=1e-4, atol=1e-4), (out, ref)
    print("KERNEL_OK")
</pallas_src>

<mosaic_0001>
module attributes {stable_mosaic.version = 11 : i64} {
  func.func @_contour_kernel(%arg0: i32, %arg1: memref<2x4x16x16xf32, #tpu.memory_space<vmem>>, %arg2: memref<2x4x16x16xf32, #tpu.memory_space<vmem>>, %arg3: memref<1x8x128xf32, #tpu.memory_space<vmem>>, %arg4: memref<1x8x128xf32, #tpu.memory_space<vmem>>) attributes {dimension_semantics = [#tpu.dimension_semantics<parallel>], iteration_bounds = array<i64: 1>, scalar_prefetch = 0 : i64, scratch_operands = 0 : i64, tpu.core_type = #tpu.core_type<tc>, window_params = [{transform_indices = @transform_0, window_bounds = array<i64: 2, 4, 16, 16>}, {transform_indices = @transform_1, window_bounds = array<i64: 2, 4, 16, 16>}, {transform_indices = @transform_2, window_bounds = array<i64: 1, 8, 128>}, {transform_indices = @transform_3, window_bounds = array<i64: 1, 8, 128>}]} {
    %c0 = arith.constant 0 : index
    %c0_0 = arith.constant 0 : index
    %c0_1 = arith.constant 0 : index
    %c0_2 = arith.constant 0 : index
    %0 = vector.load %arg1[%c0, %c0_0, %c0_1, %c0_2] : memref<2x4x16x16xf32, #tpu.memory_space<vmem>>, vector<2x4x16x16xf32>
    %c0_3 = arith.constant 0 : index
    %c0_4 = arith.constant 0 : index
    %c0_5 = arith.constant 0 : index
    %c0_6 = arith.constant 0 : index
    %1 = vector.load %arg2[%c0_3, %c0_4, %c0_5, %c0_6] : memref<2x4x16x16xf32, #tpu.memory_space<vmem>>, vector<2x4x16x16xf32>
    %2 = arith.subf %0, %1 : vector<2x4x16x16xf32>
    %cst = arith.constant dense<0.000000e+00> : vector<2x16x16xf32>
    %3 = vector.multi_reduction <add>, %2, %cst [1] : vector<2x4x16x16xf32> to vector<2x16x16xf32>
    %4 = vector.extract_strided_slice %3 {offsets = [0, 0, 0], sizes = [2, 14, 16], strides = [1, 1, 1]} : vector<2x16x16xf32> to vector<2x14x16xf32>
    %5 = vector.extract_strided_slice %3 {offsets = [0, 1, 0], sizes = [2, 14, 16], strides = [1, 1, 1]} : vector<2x16x16xf32> to vector<2x14x16xf32>
    %cst_7 = arith.constant 2.000000e+00 : f32
    %6 = vector.broadcast %cst_7 : f32 to vector<2x14x16xf32>
    %7 = arith.mulf %6, %5 : vector<2x14x16xf32>
    %8 = arith.addf %4, %7 : vector<2x14x16xf32>
    %9 = vector.extract_strided_slice %3 {offsets = [0, 2, 0], sizes = [2, 14, 16], strides = [1, 1, 1]} : vector<2x16x16xf32> to vector<2x14x16xf32>
    %10 = arith.addf %8, %9 : vector<2x14x16xf32>
    %11 = vector.extract_strided_slice %10 {offsets = [0, 0, 2], sizes = [2, 14, 14], strides = [1, 1, 1]} : vector<2x14x16xf32> to vector<2x14x14xf32>
    %12 = vector.extract_strided_slice %10 {offsets = [0, 0, 0], sizes = [2, 14, 14], strides = [1, 1, 1]} : vector<2x14x16xf32> to vector<2x14x14xf32>
    %13 = arith.subf %11, %12 : vector<2x14x14xf32>
    %14 = vector.extract_strided_slice %3 {offsets = [0, 0, 0], sizes = [2, 16, 14], strides = [1, 1, 1]} : vector<2x16x16xf32> to vector<2x16x14xf32>
    %15 = vector.extract_strided_slice %3 {offsets = [0, 0, 1], sizes = [2, 16, 14], strides = [1, 1, 1]} : vector<2x16x16xf32> to vector<2x16x14xf32>
    %cst_8 = arith.constant 2.000000e+00 : f32
    %16 = vector.broadcast %cst_8 : f32 to vector<2x16x14xf32>
    %17 = arith.mulf %16, %15 : vector<2x16x14xf32>
    %18 = arith.addf %14, %17 : vector<2x16x14xf32>
    %19 = vector.extract_strided_slice %3 {offsets = [0, 0, 2], sizes = [2, 16, 14], strides = [1, 1, 1]} : vector<2x16x16xf32> to vector<2x16x14xf32>
    %20 = arith.addf %18, %19 : vector<2x16x14xf32>
    %21 = vector.extract_strided_slice %20 {offsets = [0, 0, 0], sizes = [2, 14, 14], strides = [1, 1, 1]} : vector<2x16x14xf32> to vector<2x14x14xf32>
    %22 = vector.extract_strided_slice %20 {offsets = [0, 2, 0], sizes = [2, 14, 14], strides = [1, 1, 1]} : vector<2x16x14xf32> to vector<2x14x14xf32>
    %23 = arith.subf %21, %22 : vector<2x14x14xf32>
    %24 = arith.mulf %13, %13 : vector<2x14x14xf32>
    %25 = vector.shape_cast %24 : vector<2x14x14xf32> to vector<1x2x14x14xf32>
    %cst_9 = arith.constant dense<0.000000e+00> : vector<1xf32>
    %26 = vector.multi_reduction <add>, %25, %cst_9 [1, 2, 3] : vector<1x2x14x14xf32> to vector<1xf32>
    %27 = vector.shape_cast %26 : vector<1xf32> to vector<1x1x1x1xf32>
    %28 = vector.extract %27[0, 0, 0, 0] : f32 from vector<1x1x1x1xf32>
    %29 = arith.mulf %23, %23 : vector<2x14x14xf32>
    %30 = vector.shape_cast %29 : vector<2x14x14xf32> to vector<1x2x14x14xf32>
    %cst_10 = arith.constant dense<0.000000e+00> : vector<1xf32>
    %31 = vector.multi_reduction <add>, %30, %cst_10 [1, 2, 3] : vector<1x2x14x14xf32> to vector<1xf32>
    %32 = vector.shape_cast %31 : vector<1xf32> to vector<1x1x1x1xf32>
    %33 = vector.extract %32[0, 0, 0, 0] : f32 from vector<1x1x1x1xf32>
    %34 = vector.broadcast %28 : f32 to vector<1x8x128xf32>
    %c0_11 = arith.constant 0 : index
    %c0_12 = arith.constant 0 : index
    %c0_13 = arith.constant 0 : index
    %35 = vector.load %arg3[%c0_11, %c0_12, %c0_13] : memref<1x8x128xf32, #tpu.memory_space<vmem>>, vector<1x8x128xf32>
    tpu.vector_store %arg3[%c0_11, %c0_12, %c0_13], %34 {strides = array<i32>} : memref<1x8x128xf32, #tpu.memory_space<vmem>>, vector<1x8x128xf32>,
    %36 = vector.broadcast %33 : f32 to vector<1x8x128xf32>
    %c0_14 = arith.constant 0 : index
    %c0_15 = arith.constant 0 : index
    %c0_16 = arith.constant 0 : index
    %37 = vector.load %arg4[%c0_14, %c0_15, %c0_16] : memref<1x8x128xf32, #tpu.memory_space<vmem>>, vector<1x8x128xf32>
    tpu.vector_store %arg4[%c0_14, %c0_15, %c0_16], %36 {strides = array<i32>} : memref<1x8x128xf32, #tpu.memory_space<vmem>>, vector<1x8x128xf32>,
    return
  }
  func.func @transform_0(%arg0: i32) -> (i32, i32, i32, i32) {
    %c0_i32 = arith.constant 0 : i32
    %c0_i32_0 = arith.constant 0 : i32
    %c0_i32_1 = arith.constant 0 : i32
    %c0_i32_2 = arith.constant 0 : i32
    return %arg0, %c0_i32, %c0_i32_0, %c0_i32_1 : i32, i32, i32, i32
  }
  func.func @transform_1(%arg0: i32) -> (i32, i32, i32, i32) {
    %c0_i32 = arith.constant 0 : i32
    %c0_i32_0 = arith.constant 0 : i32
    %c0_i32_1 = arith.constant 0 : i32
    %c0_i32_2 = arith.constant 0 : i32
    return %arg0, %c0_i32, %c0_i32_0, %c0_i32_1 : i32, i32, i32, i32
  }
  func.func @transform_2(%arg0: i32) -> (i32, i32, i32) {
    %c0_i32 = arith.constant 0 : i32
    %c0_i32_0 = arith.constant 0 : i32
    %c0_i32_1 = arith.constant 0 : i32
    return %arg0, %c0_i32, %c0_i32_0 : i32, i32, i32
  }
  func.func @transform_3(%arg0: i32) -> (i32, i32, i32) {
    %c0_i32 = arith.constant 0 : i32
    %c0_i32_0 = arith.constant 0 : i32
    %c0_i32_1 = arith.constant 0 : i32
    return %arg0, %c0_i32, %c0_i32_0 : i32, i32, i32
  }
}

</mosaic_0001>

<llo_original>
// kernel: tpu_custom_call.1
$region0: #{tpu_custom_call.1}
  #allocation0 [shape = 'u32[]', space=smem, size = 0x4, offset = 0x4, fixed_abs, tag = 'smem constant byte address 0x4 - core index']
  #allocation1 [shape = 'u32[144,128]{1,0:T(1,128)}', space=vmem, size = 0x12000, scoped, tag = 'internal scratch']
  %s0 = inlined_call_operand.hbm [shape: f32[2,4,16,16], index: 0, kind: input, shape index: {}]
  %s1 = inlined_call_operand.hbm [shape: f32[2,4,16,16], index: 1, kind: input, shape index: {}]
  %s2 = inlined_call_operand.hbm [shape: f32[1,8,128], index: 2, kind: output, shape index: {0}]
  %s3 = inlined_call_operand.hbm [shape: f32[1,8,128], index: 3, kind: output, shape index: {1}]
  %4 = xla_tuple %s2, %s3
  %s5 = sld [smem:[#allocation0]]
  $region34: #{tpu_custom_call.1} parent=0
    _
  %s7 = ssub.s32 1, %s5
  %s8 = scalar_select 0, %s7, %s5
  $region1: #{tpu_custom_call.1} parent=0
    #allocation2 [shape = 'u8[65536]{0}', space=vmem, size = 0x10000, scoped, tag = 'input window, operand 0, single buffered']
    #allocation3 [shape = 's32[1]{0}', space=sflag, size = 0x4, scoped, tag = 'scoped memory for tpu_custom_call.1']
    #allocation4 [shape = 's32[1]{0}', space=sflag, size = 0x4, scoped, tag = 'scoped memory for tpu_custom_call.1']
    #allocation5 [shape = 'u8[65536]{0}', space=vmem, size = 0x10000, scoped, tag = 'input window, operand 1, single buffered']
    #allocation6 [shape = 's32[1]{0}', space=sflag, size = 0x4, scoped, tag = 'scoped memory for tpu_custom_call.1']
    #allocation7 [shape = 'u8[4096]{0}', space=vmem, size = 0x1000, scoped, tag = 'output window, operand 0, single buffered']
    #allocation8 [shape = 'u8[4096]{0}', space=vmem, size = 0x1000, scoped, tag = 'output window, operand 1, single buffered']
    #allocation9 [shape = 's32[1]{0}', space=sflag, size = 0x4, scoped, tag = 'scoped memory for tpu_custom_call.1']
    %9 = vsyncpa [#allocation3], 0
    %10 = vsyncpa [#allocation6], 0
    %11 = vsyncpa [#allocation4], 0
    %12 = vsyncpa [#allocation9], 0
    // Predicated region
    $region2: #{tpu_custom_call.1} parent=1 // pred_check
      _
    $region3: #{tpu_custom_call.1} parent=1 // pred_check_branch
      %14 = sbr.rel (0) target = $region5
    $region4: #{tpu_custom_call.1} parent=1 // pred_region
      %s16 = ssub.s32 2048, 2048
      %17 = vsyncadd [#allocation3], %s16
      %s18 = sshll.u32 [#allocation2], 4
      %s19 = int_to_ptr.vmem [resolvable:$true] %s18
      %24 = dma.hbm_to_vmem [thread:$0]  %s0, 2048, %s19, [#allocation3], 128, 128, 8
    $region5: #{tpu_custom_call.1} parent=1 // pred_fallthru
      _
    // Predicated region
    $region6: #{tpu_custom_call.1} parent=1 // pred_check
      _
    $region7: #{tpu_custom_call.1} parent=1 // pred_check_branch
      %26 = sbr.rel (0) target = $region9
    $region8: #{tpu_custom_call.1} parent=1 // pred_region
      %s28 = ssub.s32 2048, 2048
      %29 = vsyncadd [#allocation6], %s28
      %s30 = sshll.u32 [#allocation5], 4
      %s31 = int_to_ptr.vmem [resolvable:$true] %s30
      %36 = dma.hbm_to_vmem [thread:$0]  %s1, 2048, %s31, [#allocation6], 128, 128, 8
    $region9: #{tpu_custom_call.1} parent=1 // pred_fallthru
      _
    // Predicated region
    $region10: #{tpu_custom_call.1} parent=1 // pred_check
      _
    $region11: #{tpu_custom_call.1} parent=1 // pred_check_branch
      %38 = sbr.rel (0) target = $region13
    $region12: #{tpu_custom_call.1} parent=1 // pred_region
      %39 = dma.done [#allocation3], 2048
    $region13: #{tpu_custom_call.1} parent=1 // pred_fallthru
      _
    // Predicated region
    $region14: #{tpu_custom_call.1} parent=1 // pred_check
      _
    $region15: #{tpu_custom_call.1} parent=1 // pred_check_branch
      %41 = sbr.rel (0) target = $region17
    $region16: #{tpu_custom_call.1} parent=1 // pred_region
      %42 = dma.done [#allocation6], 2048
    $region17: #{tpu_custom_call.1} parent=1 // pred_fallthru
      _
    %v43 = vld [vmem:[#allocation2] sm:$0xff]
    %v44 = vld [vmem:[#allocation2 + $0x8] sm:$0xff]
    %v45 = vld [vmem:[#allocation2 + $0x10] sm:$0xff]
    %v46 = vld [vmem:[#allocation2 + $0x18] sm:$0xff]
    %v47 = vld [vmem:[#allocation2 + $0x20] sm:$0xff]
    %v48 = vld [vmem:[#allocation2 + $0x28] sm:$0xff]
    %v49 = vld [vmem:[#allocation2 + $0x30] sm:$0xff]
    %v50 = vld [vmem:[#allocation2 + $0x38] sm:$0xff]
    %v51 = vld [vmem:[#allocation2 + $0x40] sm:$0xff]
    %v52 = vld [vmem:[#allocation2 + $0x48] sm:$0xff]
    %v53 = vld [vmem:[#allocation2 + $0x50] sm:$0xff]
    %v54 = vld [vmem:[#allocation2 + $0x58] sm:$0xff]
    %v55 = vld [vmem:[#allocation2 + $0x60] sm:$0xff]
    %v56 = vld [vmem:[#allocation2 + $0x68] sm:$0xff]
    %v57 = vld [vmem:[#allocation2 + $0x70] sm:$0xff]
    %v58 = vld [vmem:[#allocation2 + $0x78] sm:$0xff]
    %v59 = vld [vmem:[#allocation5] sm:$0xff]
    %v60 = vld [vmem:[#allocation5 + $0x8] sm:$0xff]
    %v61 = vld [vmem:[#allocation5 + $0x10] sm:$0xff]
    %v62 = vld [vmem:[#allocation5 + $0x18] sm:$0xff]
    %v63 = vld [vmem:[#allocation5 + $0x20] sm:$0xff]
    %v64 = vld [vmem:[#allocation5 + $0x28] sm:$0xff]
    %v65 = vld [vmem:[#allocation5 + $0x30] sm:$0xff]
    %v66 = vld [vmem:[#allocation5 + $0x38] sm:$0xff]
    %v67 = vld [vmem:[#allocation5 + $0x40] sm:$0xff]
    %v68 = vld [vmem:[#allocation5 + $0x48] sm:$0xff]
    %v69 = vld [vmem:[#allocation5 + $0x50] sm:$0xff]
    %v70 = vld [vmem:[#allocation5 + $0x58] sm:$0xff]
    %v71 = vld [vmem:[#allocation5 + $0x60] sm:$0xff]
    %v72 = vld [vmem:[#allocation5 + $0x68] sm:$0xff]
    %v73 = vld [vmem:[#allocation5 + $0x70] sm:$0xff]
    %v74 = vld [vmem:[#allocation5 + $0x78] sm:$0xff]
    %v75 = vsub.f32 %v43, %v59
    %v76 = vsub.f32 %v44, %v60
    %v77 = vsub.f32 %v45, %v61
    %v78 = vsub.f32 %v46, %v62
    %v79 = vsub.f32 %v47, %v63
    %v80 = vsub.f32 %v48, %v64
    %v81 = vsub.f32 %v49, %v65
    %v82 = vsub.f32 %v50, %v66
    %v83 = vsub.f32 %v51, %v67
    %v84 = vsub.f32 %v52, %v68
    %v85 = vsub.f32 %v53, %v69
    %v86 = vsub.f32 %v54, %v70
    %v87 = vsub.f32 %v55, %v71
    %v88 = vsub.f32 %v56, %v72
    %v89 = vsub.f32 %v57, %v73
    %v90 = vsub.f32 %v58, %v74
    %vm91 = vcmask 130048
    %v92 = vsel %vm91, %v75, 0.0
    %v93 = vsel %vm91, %v77, 0.0
    %v94 = vadd.f32 %v92, %v93
    %v95 = vsel %vm91, %v79, 0.0
    %v96 = vadd.f32 %v94, %v95
    %v97 = vsel %vm91, %v81, 0.0
    %v98 = vadd.f32 %v96, %v97
    %v99 = vsel %vm91, %v76, 0.0
    %v100 = vsel %vm91, %v78, 0.0
    %v101 = vadd.f32 %v99, %v100
    %v102 = vsel %vm91, %v80, 0.0
    %v103 = vadd.f32 %v101, %v102
    %v104 = vsel %vm91, %v82, 0.0
    %v105 = vadd.f32 %v103, %v104
    %v106 = vsel %vm91, %v83, 0.0
    %v107 = vsel %vm91, %v85, 0.0
    %v108 = vadd.f32 %v106, %v107
    %v109 = vsel %vm91, %v87, 0.0
    %v110 = vadd.f32 %v108, %v109
    %v111 = vsel %vm91, %v89, 0.0
    %v112 = vadd.f32 %v110, %v111
    %v113 = vsel %vm91, %v84, 0.0
    %v114 = vsel %vm91, %v86, 0.0
    %v115 = vadd.f32 %v113, %v114
    %v116 = vsel %vm91, %v88, 0.0
    %v117 = vadd.f32 %v115, %v116
    %v118 = vsel %vm91, %v90, 0.0
    %v119 = vadd.f32 %v117, %v118
    %v120 = vmul.f32 %v98, 2.0
    %v121 = vmul.f32 %v105, 2.0
    %v122 = vmul.f32 %v112, 2.0
    %v123 = vmul.f32 %v119, 2.0
    %vm128 = vcmask 1046528
    %v129 = vrot.slane %v120, 1
    %v130 = vrot.slane %v121, 1
    %v131 = vsel %vm128, %v129, %v130
    %v132 = vrot.slane %v122, 1
    %v133 = vrot.slane %v123, 1
    %v134 = vsel %vm128, %v132, %v133
    %v139 = vadd.f32 %v98, %v131
    %v140 = vadd.f32 %v105, %v130
    %v141 = vadd.f32 %v112, %v134
    %v142 = vadd.f32 %v119, %v133
    %vm147 = vcmask 1045504
    %v148 = vrot.slane %v98, 2
    %v149 = vrot.slane %v105, 2
    %v150 = vsel %vm147, %v148, %v149
    %v151 = vrot.slane %v112, 2
    %v152 = vrot.slane %v119, 2
    %v153 = vsel %vm147, %v151, %v152
    %v158 = vadd.f32 %v139, %v150
    %v159 = vadd.f32 %v140, %v149
    %v160 = vadd.f32 %v141, %v153
    %v161 = vadd.f32 %v142, %v152
    %166 = vrot.lane.b32.xlu0 %v158, 2
    %v167 = vpop.permute.xlu0 %166
    %168 = vrot.lane.b32.xlu0 %v159, 2
    %v169 = vpop.permute.xlu0 %168
    %170 = vrot.lane.b32.xlu0 %v160, 2
    %v171 = vpop.permute.xlu0 %170
    %172 = vrot.lane.b32.xlu0 %v161, 2
    %v173 = vpop.permute.xlu0 %172
    %v178 = vsub.f32 %v158, %v167
    %v179 = vsub.f32 %v159, %v169
    %v180 = vsub.f32 %v160, %v171
    %v181 = vsub.f32 %v161, %v173
    %182 = vrot.lane.b32.xlu0 %v120, 127
    %v183 = vpop.permute.xlu0 %182
    %184 = vrot.lane.b32.xlu0 %v121, 127
    %v185 = vpop.permute.xlu0 %184
    %186 = vrot.lane.b32.xlu0 %v122, 127
    %v187 = vpop.permute.xlu0 %186
    %188 = vrot.lane.b32.xlu0 %v123, 127
    %v189 = vpop.permute.xlu0 %188
    %v194 = vadd.f32 %v98, %v183
    %v195 = vadd.f32 %v105, %v185
    %v196 = vadd.f32 %v112, %v187
    %v197 = vadd.f32 %v119, %v189
    %198 = vrot.lane.b32.xlu0 %v98, 126
    %v199 = vpop.permute.xlu0 %198
    %200 = vrot.lane.b32.xlu0 %v105, 126
    %v201 = vpop.permute.xlu0 %200
    %202 = vrot.lane.b32.xlu0 %v112, 126
    %v203 = vpop.permute.xlu0 %202
    %204 = vrot.lane.b32.xlu0 %v119, 126
    %v205 = vpop.permute.xlu0 %204
    %v210 = vadd.f32 %v194, %v199
    %v211 = vadd.f32 %v195, %v201
    %v212 = vadd.f32 %v196, %v203
    %v213 = vadd.f32 %v197, %v205
    %v218 = vrot.slane %v210, 2
    %v219 = vrot.slane %v211, 2
    %v220 = vsel %vm147, %v218, %v219
    %v221 = vrot.slane %v212, 2
    %v222 = vrot.slane %v213, 2
    %v223 = vsel %vm147, %v221, %v222
    %v228 = vsub.f32 %v210, %v220
    %v229 = vsub.f32 %v211, %v219
    %v230 = vsub.f32 %v212, %v223
    %v231 = vsub.f32 %v213, %v222
    %v232 = vmul.f32 %v178, %v178
    %v233 = vmul.f32 %v179, %v179
    %v234 = vmul.f32 %v180, %v180
    %v235 = vmul.f32 %v181, %v181
    %240 = vrot.lane.b32.xlu0 %v232, 126
    %v241 = vpop.permute.xlu0 %240
    %242 = vrot.lane.b32.xlu0 %v233, 126
    %v243 = vpop.permute.xlu0 %242
    %244 = vrot.lane.b32.xlu0 %v234, 126
    %v245 = vpop.permute.xlu0 %244
    %246 = vrot.lane.b32.xlu0 %v235, 126
    %v247 = vpop.permute.xlu0 %246
    %vm252 = vcmask 113664
    %v253 = vsel %vm252, %v241, 0.0
    %vm254 = vcmask 111616
    %v255 = vsel %vm254, %v243, 0.0
    %v256 = vadd.f32 %v253, %v255
    %v257 = vsel %vm252, %v245, 0.0
    %v258 = vadd.f32 %v256, %v257
    %v259 = vsel %vm254, %v247, 0.0
    %v260 = vadd.f32 %v258, %v259
    %261 = vadd.xlane.f32.xlu0 %v260
    %v262 = vpop.xlane.xlu0 %261
    %v263 = vrot.slane %v262, 4
    %v264 = vadd.f32 %v262, %v263
    %v265 = vrot.slane %v264, 2
    %v266 = vadd.f32 %v264, %v265
    %v267 = vrot.slane %v266, 1
    %v268 = vadd.f32 %v266, %v267
    %s269 = vtos %v268
    %v270 = vmul.f32 %v228, %v228
    %v271 = vmul.f32 %v229, %v229
    %v272 = vmul.f32 %v230, %v230
    %v273 = vmul.f32 %v231, %v231
    %v274 = vsel %vm252, %v270, 0.0
    %v275 = vsel %vm254, %v271, 0.0
    %v276 = vadd.f32 %v274, %v275
    %v277 = vsel %vm252, %v272, 0.0
    %v278 = vadd.f32 %v276, %v277
    %v279 = vsel %vm254, %v273, 0.0
    %v280 = vadd.f32 %v278, %v279
    %281 = vadd.xlane.f32.xlu0 %v280
    %v282 = vpop.xlane.xlu0 %281
    %v283 = vrot.slane %v282, 4
    %v284 = vadd.f32 %v282, %v283
    %v285 = vrot.slane %v284, 2
    %v286 = vadd.f32 %v284, %v285
    %v287 = vrot.slane %v286, 1
    %v288 = vadd.f32 %v286, %v287
    %s289 = vtos %v288
    %v290 = vstv %s269
    %291 = vst [vmem:[#allocation7] sm:$0xff] %v290
    %v292 = vstv %s289
    %293 = vst [vmem:[#allocation8] sm:$0xff] %v292
    // Predicated region
    $region18: #{tpu_custom_call.1} parent=1 // pred_check
      _
    $region19: #{tpu_custom_call.1} parent=1 // pred_check_branch
      %295 = sbr.rel (0) target = $region21
    $region20: #{tpu_custom_call.1} parent=1 // pred_region
      %s297 = ssub.s32 128, 128
      %298 = vsyncadd [#allocation4], %s297
      %s300 = sshll.u32 [#allocation7], 4
      %s301 = int_to_ptr.vmem [resolvable:$true] %s300
      %303 = dma.vmem_to_hbm [thread:$0]  %s301, 128, %s2, [#allocation4]
    $region21: #{tpu_custom_call.1} parent=1 // pred_fallthru
      _
    // Predicated region
    $region22: #{tpu_custom_call.1} parent=1 // pred_check
      _
    $region23: #{tpu_custom_call.1} parent=1 // pred_check_branch
      %305 = sbr.rel (0) target = $region25
    $region24: #{tpu_custom_call.1} parent=1 // pred_region
      %s307 = ssub.s32 128, 128
      %308 = vsyncadd [#allocation9], %s307
      %s310 = sshll.u32 [#allocation8], 4
      %s311 = int_to_ptr.vmem [resolvable:$true] %s310
      %313 = dma.vmem_to_hbm [thread:$0]  %s311, 128, %s3, [#allocation9]
    $region25: #{tpu_custom_call.1} parent=1 // pred_fallthru
      _
    // Predicated region
    $region26: #{tpu_custom_call.1} parent=1 // pred_check
      _
    $region27: #{tpu_custom_call.1} parent=1 // pred_check_branch
      %315 = sbr.rel (0) target = $region29
    $region28: #{tpu_custom_call.1} parent=1 // pred_region
      %316 = dma.done [#allocation4], 128
    $region29: #{tpu_custom_call.1} parent=1 // pred_fallthru
      _
    // Predicated region
    $region30: #{tpu_custom_call.1} parent=1 // pred_check
      _
    $region31: #{tpu_custom_call.1} parent=1 // pred_check_branch
      %318 = sbr.rel (0) target = $region33
    $region32: #{tpu_custom_call.1} parent=1 // pred_region
      %319 = dma.done [#allocation9], 128
    $region33: #{tpu_custom_call.1} parent=1 // pred_fallthru
      _
    %320 = vsyncpa [#allocation3], 1
    %321 = vsyncpa [#allocation6], 1
    %322 = vsyncpa [#allocation4], 1
    %323 = vsyncpa [#allocation9], 1

</llo_original>
